<compile_context>
chip_gen: v6e
topology: v6e:2x2x1
jax: 0.10.0
libtpu: 0.0.40
codegen_flags: <defaults>
</compile_context>

<pallas_src>
import jax
import jax.numpy as jnp
from jax.experimental import pallas as pl
from jax.experimental.pallas import tpu as pltpu

BN_EPS = 1e-5
NEG_SLOPE = 0.2
LANE = 128


def _round_up(x, m):
    return (x + m - 1) // m * m


def _tpu_vmem_budget():
    """(vmem_limit_bytes, target_pixels_per_tile) tuned per TPU generation."""
    try:
        phys = int(pltpu.get_tpu_info().vmem_capacity_bytes)
    except Exception:
        phys = 0
    if phys > 64 * 1024 * 1024:           # v5e / v6e: 128 MiB physical VMEM
        return 64 * 1024 * 1024, 1024
    return 32 * 1024 * 1024, 512          # v7x (64 MiB) / unknown: conservative


def _pick_row_tile(r, wo, c4, ocp, target_pix, vmem_budget):
    """Output rows per grid step: >=2 tiles when possible (v7x megacore),
    (ti*wo) a multiple of 8 (sublane tiling), bounded VMEM use."""
    ti = max(1, target_pix // max(wo, 1))
    if r >= 2:
        ti = min(ti, max(1, r // 2))

    def vmem_bytes(t):
        views = 2 * 2 * t * (wo + 1) * c4 * 2      # two views, double-buffered, bf16
        ybuf = 2 * t * wo * ocp * 2                # y block, double-buffered, bf16
        wres = 2 * 4 * c4 * ocp * 2                # resident weights (worst case 2x)
        return views + ybuf + wres

    while ti > 8 and vmem_bytes(ti) > vmem_budget:
        ti //= 2
    if ti >= 8:
        ti = (ti // 8) * 8
    elif (ti * wo) % 8 != 0:
        ti = 8                                     # pad rows instead (tiny shapes)
    return ti


# -------- Pass 1: conv (4 accumulating matmuls) + per-tile BN partial stats ----
def conv_stats_kernel(sa_ref, sb_ref, w_ref, y_ref, sum_ref, sq_ref):
    ti, wo1, c4 = sa_ref.shape
    wo = wo1 - 1
    pix = ti * wo
    sa = sa_ref[...]                                   # (TI, Wo+1, 4C) bf16, a = 0 rows
    sb = sb_ref[...]                                   # (TI, Wo+1, 4C) bf16, a = 1 rows
    # In-kernel column shifts (b = 0 / 1), flattened to output pixels.
    a0 = sa[:, :wo, :].reshape(pix, c4)
    a1 = sa[:, 1:, :].reshape(pix, c4)
    b0 = sb[:, :wo, :].reshape(pix, c4)
    b1 = sb[:, 1:, :].reshape(pix, c4)
    # 4 accumulating MXU matmuls == the 4x4 stride-2 conv (f32 accumulate).
    y = jnp.dot(a0, w_ref[0], preferred_element_type=jnp.float32)
    y = y + jnp.dot(a1, w_ref[1], preferred_element_type=jnp.float32)
    y = y + jnp.dot(b0, w_ref[2], preferred_element_type=jnp.float32)
    y = y + jnp.dot(b1, w_ref[3], preferred_element_type=jnp.float32)
    y_ref[...] = y.astype(y_ref.dtype)                 # bf16 intermediate (no f32 round trip)
    # Per-tile BN partials straight from the f32 accumulator (exact); finalized
    # in the wrapper so the grid axis stays "parallel".
    # (If this ever becomes VALU/XLU-bound, move the column sums onto the MXU.)
    sum_ref[...] = jnp.sum(y, axis=0, keepdims=True)[None]
    sq_ref[...] = jnp.sum(y * y, axis=0, keepdims=True)[None]


# -------- Pass 2: fused BN affine + LeakyReLU ----------------------------------
def bn_lrelu_kernel(y_ref, scale_ref, shift_ref, o_ref):
    z = y_ref[...].astype(jnp.float32) * scale_ref[...] + shift_ref[...]
    o_ref[...] = jnp.where(z >= 0, z, NEG_SLOPE * z)


def down_forward(x, conv_w, conv_b, bn_gamma, bn_beta, *, nchw_output=True):
    """Down(ic, oc) forward. x: (N, ic, H, W) f32 -> (N, oc, H/2, W/2) f32."""
    del conv_b  # Conv bias cancels exactly under training-mode BatchNorm.

    n, ic, h, w = x.shape
    assert h % 2 == 0 and w % 2 == 0, (h, w)
    oc = conv_w.shape[0]
    ho, wo = h // 2, w // 2
    c4 = 4 * ic
    ocp = _round_up(oc, LANE)
    r = n * ho                       # number of output rows (flattened over N)
    m_pix = r * wo                   # true number of output pixels

    vmem_limit, target_pix = _tpu_vmem_budget()
    ti = _pick_row_tile(r, wo, c4, ocp, target_pix, vmem_limit // 2)
    n_tiles = pl.cdiv(r, ti)
    rp = n_tiles * ti
    tpix = ti * wo
    mp = rp * wo

    # ---- space-to-depth of the zero-padded input: conv(4,4,s=2,p=1) becomes a
    # 2x2 stride-1 conv over (N, Ho+1, Wo+1, 4*ic) with channel order (dy,dx,c).
    xp = jnp.pad(x, ((0, 0), (0, 0), (1, 1), (1, 1)))
    s2d = xp.reshape(n, ic, ho + 1, 2, wo + 1, 2)          # (n,c,bi,dy,bj,dx)
    s2d = jnp.transpose(s2d, (0, 2, 4, 3, 5, 1))           # (n,bi,bj,dy,dx,c)
    s2d = s2d.reshape(n, ho + 1, wo + 1, c4).astype(jnp.bfloat16)
    # Two row-shifted views (a = 0 / 1); column shifts happen in-kernel, so the
    # materialized footprint stays ~1x the input (no im2col blow-up).
    s_a = s2d[:, :ho].reshape(r, wo + 1, c4)
    s_b = s2d[:, 1:].reshape(r, wo + 1, c4)
    if rp != r:
        pad = ((0, rp - r), (0, 0), (0, 0))
        s_a = jnp.pad(s_a, pad)       # zero rows -> y == 0 -> no effect on stats
        s_b = jnp.pad(s_b, pad)

    # ---- conv weights regrouped to match: (4 = [a,b], 4*ic = [dy,dx,c], ocp)
    w2 = conv_w.reshape(oc, ic, 2, 2, 2, 2)                # (o,c,a,dy,b,dx)
    w2 = jnp.transpose(w2, (2, 4, 3, 5, 1, 0)).reshape(4, c4, oc)
    w2 = jnp.pad(w2, ((0, 0), (0, 0), (0, ocp - oc))).astype(jnp.bfloat16)

    cparams = pltpu.CompilerParams(
        dimension_semantics=("parallel",),
        vmem_limit_bytes=vmem_limit,
    )

    cost1 = pl.CostEstimate(
        flops=2 * mp * (4 * c4) * ocp,
        transcendentals=0,
        bytes_accessed=(2 * rp * (wo + 1) * c4 * 2 + 4 * c4 * ocp * 2
                        + mp * ocp * 2 + 2 * n_tiles * ocp * 4),
    )
    y_flat, psum, psq = pl.pallas_call(
        conv_stats_kernel,
        out_shape=(jax.ShapeDtypeStruct((mp, ocp), jnp.bfloat16),
                   jax.ShapeDtypeStruct((n_tiles, 1, ocp), jnp.float32),
                   jax.ShapeDtypeStruct((n_tiles, 1, ocp), jnp.float32)),
        grid=(n_tiles,),
        in_specs=[
            pl.BlockSpec((ti, wo + 1, c4), lambda i: (i, 0, 0)),
            pl.BlockSpec((ti, wo + 1, c4), lambda i: (i, 0, 0)),
            pl.BlockSpec((4, c4, ocp), lambda i: (0, 0, 0)),   # weights resident
        ],
        out_specs=(
            pl.BlockSpec((tpix, ocp), lambda i: (i, 0)),
            pl.BlockSpec((1, 1, ocp), lambda i: (i, 0, 0)),
            pl.BlockSpec((1, 1, ocp), lambda i: (i, 0, 0)),
        ),
        compiler_params=cparams,
        cost_estimate=cost1,
    )(s_a, s_b, w2)

    # ---- finalize BN stats (tiny reduction) and fold gamma into scale/shift.
    # NOTE: var = E[y^2] - mean^2 in f32; clamped at 0.  Switch to Chan-style
    # centered partials if drift vs the f32 reference is ever observed.
    ssum = jnp.sum(psum[:, 0, :], axis=0)
    ssq = jnp.sum(psq[:, 0, :], axis=0)
    mean = ssum / m_pix
    var = jnp.maximum(ssq / m_pix - mean * mean, 0.0)
    inv = jax.lax.rsqrt(var + BN_EPS)
    gamma_p = jnp.pad(bn_gamma, (0, ocp - oc))
    beta_p = jnp.pad(bn_beta, (0, ocp - oc))
    scale = (gamma_p * inv).reshape(1, ocp)
    shift = (beta_p - mean * gamma_p * inv).reshape(1, ocp)

    cost2 = pl.CostEstimate(
        flops=3 * mp * ocp,
        transcendentals=0,
        bytes_accessed=mp * ocp * 2 + mp * ocp * 4 + 2 * ocp * 4,
    )
    out_flat = pl.pallas_call(
        bn_lrelu_kernel,
        out_shape=jax.ShapeDtypeStruct((mp, ocp), jnp.float32),
        grid=(n_tiles,),
        in_specs=[
            pl.BlockSpec((tpix, ocp), lambda i: (i, 0)),
            pl.BlockSpec((1, ocp), lambda i: (0, 0)),          # scale resident
            pl.BlockSpec((1, ocp), lambda i: (0, 0)),          # shift resident
        ],
        out_specs=pl.BlockSpec((tpix, ocp), lambda i: (i, 0)),
        compiler_params=cparams,
        cost_estimate=cost2,
    )(y_flat, scale, shift)

    out = out_flat[:m_pix, :oc].reshape(n, ho, wo, oc)
    if nchw_output:
        # TODO(synk): when chaining Down blocks keep the lane-dense NHWC slab
        # (nchw_output=False) and only transpose at the model boundary.
        out = jnp.transpose(out, (0, 3, 1, 2))
    return out


if __name__ == "__main__":
    ic, oc = 4, 8
    n, h, w = 2, 16, 16

    key = jax.random.PRNGKey(0)
    kx, kw_, kb, kg, kbt = jax.random.split(key, 5)

    x = jax.random.normal(kx, (n, ic, h, w), dtype=jnp.float32)
    # Deterministic parameter init (synthetic; matches nn.Conv2d / nn.BatchNorm2d shapes).
    fan_in = ic * 4 * 4
    bound = 1.0 / (fan_in ** 0.5)
    conv_w = jax.random.uniform(kw_, (oc, ic, 4, 4), jnp.float32, -bound, bound)
    conv_b = jax.random.uniform(kb, (oc,), jnp.float32, -bound, bound)
    bn_gamma = jnp.ones((oc,), jnp.float32)
    bn_beta = jnp.zeros((oc,), jnp.float32)

    out = jax.jit(down_forward)(x, conv_w, conv_b, bn_gamma, bn_beta)
    out = jax.block_until_ready(out)
    assert out.shape == (n, oc, h // 2, w // 2), out.shape
    print("KERNEL_OK")
</pallas_src>

<mosaic_0001>
module attributes {stable_mosaic.version = 11 : i64} {
  func.func @conv_stats_kernel(%arg0: i32, %arg1: memref<8x9x16xbf16, #tpu.memory_space<vmem>>, %arg2: memref<8x9x16xbf16, #tpu.memory_space<vmem>>, %arg3: memref<4x16x128xbf16, #tpu.memory_space<vmem>>, %arg4: memref<64x128xbf16, #tpu.memory_space<vmem>>, %arg5: memref<1x1x128xf32, #tpu.memory_space<vmem>>, %arg6: memref<1x1x128xf32, #tpu.memory_space<vmem>>) attributes {dimension_semantics = [#tpu.dimension_semantics<parallel>], iteration_bounds = array<i64: 2>, scalar_prefetch = 0 : i64, scratch_operands = 0 : i64, tpu.core_type = #tpu.core_type<tc>, window_params = [{transform_indices = @transform_0, window_bounds = array<i64: 8, 9, 16>}, {transform_indices = @transform_1, window_bounds = array<i64: 8, 9, 16>}, {pipeline_mode = #tpu.pipeline_mode<synchronous>, transform_indices = @transform_2, window_bounds = array<i64: 4, 16, 128>}, {transform_indices = @transform_3, window_bounds = array<i64: 64, 128>}, {transform_indices = @transform_4, window_bounds = array<i64: 1, 1, 128>}, {transform_indices = @transform_5, window_bounds = array<i64: 1, 1, 128>}]} {
    %c0 = arith.constant 0 : index
    %c0_0 = arith.constant 0 : index
    %c0_1 = arith.constant 0 : index
    %0 = vector.load %arg1[%c0, %c0_0, %c0_1] : memref<8x9x16xbf16, #tpu.memory_space<vmem>>, vector<8x9x16xbf16>
    %c0_2 = arith.constant 0 : index
    %c0_3 = arith.constant 0 : index
    %c0_4 = arith.constant 0 : index
    %1 = vector.load %arg2[%c0_2, %c0_3, %c0_4] : memref<8x9x16xbf16, #tpu.memory_space<vmem>>, vector<8x9x16xbf16>
    %2 = vector.extract_strided_slice %0 {offsets = [0, 0, 0], sizes = [8, 8, 16], strides = [1, 1, 1]} : vector<8x9x16xbf16> to vector<8x8x16xbf16>
    %3 = vector.shape_cast %2 : vector<8x8x16xbf16> to vector<64x16xbf16>
    %4 = vector.extract_strided_slice %0 {offsets = [0, 1, 0], sizes = [8, 8, 16], strides = [1, 1, 1]} : vector<8x9x16xbf16> to vector<8x8x16xbf16>
    %5 = vector.shape_cast %4 : vector<8x8x16xbf16> to vector<64x16xbf16>
    %6 = vector.extract_strided_slice %1 {offsets = [0, 0, 0], sizes = [8, 8, 16], strides = [1, 1, 1]} : vector<8x9x16xbf16> to vector<8x8x16xbf16>
    %7 = vector.shape_cast %6 : vector<8x8x16xbf16> to vector<64x16xbf16>
    %8 = vector.extract_strided_slice %1 {offsets = [0, 1, 0], sizes = [8, 8, 16], strides = [1, 1, 1]} : vector<8x9x16xbf16> to vector<8x8x16xbf16>
    %9 = vector.shape_cast %8 : vector<8x8x16xbf16> to vector<64x16xbf16>
    %c0_5 = arith.constant 0 : index
    %c0_6 = arith.constant 0 : index
    %c0_7 = arith.constant 0 : index
    %10 = vector.load %arg3[%c0_5, %c0_6, %c0_7] : memref<4x16x128xbf16, #tpu.memory_space<vmem>>, vector<1x16x128xbf16>
    %11 = vector.shape_cast %10 : vector<1x16x128xbf16> to vector<16x128xbf16>
    %cst = arith.constant dense<0.000000e+00> : vector<64x128xf32>
    %12 = tpu.matmul %3, %11, %cst {dimension_numbers = #tpu.dot_dimension_numbers<[1], [0], [0], [1], [0, 0, 1, 1], [], []>} : vector<64x16xbf16>, vector<16x128xbf16>, vector<64x128xf32> -> vector<64x128xf32>
    %c1 = arith.constant 1 : index
    %c0_8 = arith.constant 0 : index
    %c0_9 = arith.constant 0 : index
    %13 = vector.load %arg3[%c1, %c0_8, %c0_9] : memref<4x16x128xbf16, #tpu.memory_space<vmem>>, vector<1x16x128xbf16>
    %14 = vector.shape_cast %13 : vector<1x16x128xbf16> to vector<16x128xbf16>
    %cst_10 = arith.constant dense<0.000000e+00> : vector<64x128xf32>
    %15 = tpu.matmul %5, %14, %cst_10 {dimension_numbers = #tpu.dot_dimension_numbers<[1], [0], [0], [1], [0, 0, 1, 1], [], []>} : vector<64x16xbf16>, vector<16x128xbf16>, vector<64x128xf32> -> vector<64x128xf32>
    %16 = arith.addf %12, %15 : vector<64x128xf32>
    %c2 = arith.constant 2 : index
    %c0_11 = arith.constant 0 : index
    %c0_12 = arith.constant 0 : index
    %17 = vector.load %arg3[%c2, %c0_11, %c0_12] : memref<4x16x128xbf16, #tpu.memory_space<vmem>>, vector<1x16x128xbf16>
    %18 = vector.shape_cast %17 : vector<1x16x128xbf16> to vector<16x128xbf16>
    %cst_13 = arith.constant dense<0.000000e+00> : vector<64x128xf32>
    %19 = tpu.matmul %7, %18, %cst_13 {dimension_numbers = #tpu.dot_dimension_numbers<[1], [0], [0], [1], [0, 0, 1, 1], [], []>} : vector<64x16xbf16>, vector<16x128xbf16>, vector<64x128xf32> -> vector<64x128xf32>
    %20 = arith.addf %16, %19 : vector<64x128xf32>
    %c3 = arith.constant 3 : index
    %c0_14 = arith.constant 0 : index
    %c0_15 = arith.constant 0 : index
    %21 = vector.load %arg3[%c3, %c0_14, %c0_15] : memref<4x16x128xbf16, #tpu.memory_space<vmem>>, vector<1x16x128xbf16>
    %22 = vector.shape_cast %21 : vector<1x16x128xbf16> to vector<16x128xbf16>
    %cst_16 = arith.constant dense<0.000000e+00> : vector<64x128xf32>
    %23 = tpu.matmul %9, %22, %cst_16 {dimension_numbers = #tpu.dot_dimension_numbers<[1], [0], [0], [1], [0, 0, 1, 1], [], []>} : vector<64x16xbf16>, vector<16x128xbf16>, vector<64x128xf32> -> vector<64x128xf32>
    %24 = arith.addf %20, %23 : vector<64x128xf32>
    %25 = arith.truncf %24 : vector<64x128xf32> to vector<64x128xbf16>
    %c0_17 = arith.constant 0 : index
    %c0_18 = arith.constant 0 : index
    %26 = vector.load %arg4[%c0_17, %c0_18] : memref<64x128xbf16, #tpu.memory_space<vmem>>, vector<64x128xbf16>
    tpu.vector_store %arg4[%c0_17, %c0_18], %25 {strides = array<i32>} : memref<64x128xbf16, #tpu.memory_space<vmem>>, vector<64x128xbf16>,
    %cst_19 = arith.constant dense<0.000000e+00> : vector<128xf32>
    %27 = vector.multi_reduction <add>, %24, %cst_19 [0] : vector<64x128xf32> to vector<128xf32>
    %28 = vector.shape_cast %27 : vector<128xf32> to vector<1x128xf32>
    %29 = vector.shape_cast %28 : vector<1x128xf32> to vector<1x1x128xf32>
    %c0_20 = arith.constant 0 : index
    %c0_21 = arith.constant 0 : index
    %c0_22 = arith.constant 0 : index
    %30 = vector.load %arg5[%c0_20, %c0_21, %c0_22] : memref<1x1x128xf32, #tpu.memory_space<vmem>>, vector<1x1x128xf32>
    tpu.vector_store %arg5[%c0_20, %c0_21, %c0_22], %29 {strides = array<i32>} : memref<1x1x128xf32, #tpu.memory_space<vmem>>, vector<1x1x128xf32>,
    %31 = arith.mulf %24, %24 : vector<64x128xf32>
    %cst_23 = arith.constant dense<0.000000e+00> : vector<128xf32>
    %32 = vector.multi_reduction <add>, %31, %cst_23 [0] : vector<64x128xf32> to vector<128xf32>
    %33 = vector.shape_cast %32 : vector<128xf32> to vector<1x128xf32>
    %34 = vector.shape_cast %33 : vector<1x128xf32> to vector<1x1x128xf32>
    %c0_24 = arith.constant 0 : index
    %c0_25 = arith.constant 0 : index
    %c0_26 = arith.constant 0 : index
    %35 = vector.load %arg6[%c0_24, %c0_25, %c0_26] : memref<1x1x128xf32, #tpu.memory_space<vmem>>, vector<1x1x128xf32>
    tpu.vector_store %arg6[%c0_24, %c0_25, %c0_26], %34 {strides = array<i32>} : memref<1x1x128xf32, #tpu.memory_space<vmem>>, vector<1x1x128xf32>,
    return
  }
  func.func @transform_0(%arg0: i32) -> (i32, i32, i32) {
    %c0_i32 = arith.constant 0 : i32
    %c0_i32_0 = arith.constant 0 : i32
    %c0_i32_1 = arith.constant 0 : i32
    return %arg0, %c0_i32, %c0_i32_0 : i32, i32, i32
  }
  func.func @transform_1(%arg0: i32) -> (i32, i32, i32) {
    %c0_i32 = arith.constant 0 : i32
    %c0_i32_0 = arith.constant 0 : i32
    %c0_i32_1 = arith.constant 0 : i32
    return %arg0, %c0_i32, %c0_i32_0 : i32, i32, i32
  }
  func.func @transform_2(%arg0: i32) -> (i32, i32, i32) {
    %c0_i32 = arith.constant 0 : i32
    %c0_i32_0 = arith.constant 0 : i32
    %c0_i32_1 = arith.constant 0 : i32
    %c0_i32_2 = arith.constant 0 : i32
    return %c0_i32, %c0_i32_0, %c0_i32_1 : i32, i32, i32
  }
  func.func @transform_3(%arg0: i32) -> (i32, i32) {
    %c0_i32 = arith.constant 0 : i32
    %c0_i32_0 = arith.constant 0 : i32
    return %arg0, %c0_i32 : i32, i32
  }
  func.func @transform_4(%arg0: i32) -> (i32, i32, i32) {
    %c0_i32 = arith.constant 0 : i32
    %c0_i32_0 = arith.constant 0 : i32
    %c0_i32_1 = arith.constant 0 : i32
    return %arg0, %c0_i32, %c0_i32_0 : i32, i32, i32
  }
  func.func @transform_5(%arg0: i32) -> (i32, i32, i32) {
    %c0_i32 = arith.constant 0 : i32
    %c0_i32_0 = arith.constant 0 : i32
    %c0_i32_1 = arith.constant 0 : i32
    return %arg0, %c0_i32, %c0_i32_0 : i32, i32, i32
  }
}

module attributes {stable_mosaic.version = 11 : i64} {
  func.func @bn_lrelu_kernel(%arg0: i32, %arg1: memref<64x128xbf16, #tpu.memory_space<vmem>>, %arg2: memref<1x128xf32, #tpu.memory_space<vmem>>, %arg3: memref<1x128xf32, #tpu.memory_space<vmem>>, %arg4: memref<64x128xf32, #tpu.memory_space<vmem>>) attributes {dimension_semantics = [#tpu.dimension_semantics<parallel>], iteration_bounds = array<i64: 2>, scalar_prefetch = 0 : i64, scratch_operands = 0 : i64, tpu.core_type = #tpu.core_type<tc>, window_params = [{transform_indices = @transform_0, window_bounds = array<i64: 64, 128>}, {pipeline_mode = #tpu.pipeline_mode<synchronous>, transform_indices = @transform_1, window_bounds = array<i64: 1, 128>}, {pipeline_mode = #tpu.pipeline_mode<synchronous>, transform_indices = @transform_2, window_bounds = array<i64: 1, 128>}, {transform_indices = @transform_3, window_bounds = array<i64: 64, 128>}]} {
    %c0 = arith.constant 0 : index
    %c0_0 = arith.constant 0 : index
    %0 = vector.load %arg1[%c0, %c0_0] : memref<64x128xbf16, #tpu.memory_space<vmem>>, vector<64x128xbf16>
    %1 = arith.extf %0 : vector<64x128xbf16> to vector<64x128xf32>
    %c0_1 = arith.constant 0 : index
    %c0_2 = arith.constant 0 : index
    %2 = vector.load %arg2[%c0_1, %c0_2] : memref<1x128xf32, #tpu.memory_space<vmem>>, vector<1x128xf32>
    %3 = vector.broadcast %2 : vector<1x128xf32> to vector<64x128xf32>
    %4 = arith.mulf %1, %3 : vector<64x128xf32>
    %c0_3 = arith.constant 0 : index
    %c0_4 = arith.constant 0 : index
    %5 = vector.load %arg3[%c0_3, %c0_4] : memref<1x128xf32, #tpu.memory_space<vmem>>, vector<1x128xf32>
    %6 = vector.broadcast %5 : vector<1x128xf32> to vector<64x128xf32>
    %7 = arith.addf %4, %6 : vector<64x128xf32>
    %cst = arith.constant 0.000000e+00 : f32
    %8 = vector.broadcast %cst : f32 to vector<64x128xf32>
    %9 = arith.cmpf oge, %7, %8 : vector<64x128xf32>
    %cst_5 = arith.constant 2.000000e-01 : f32
    %10 = vector.broadcast %cst_5 : f32 to vector<64x128xf32>
    %11 = arith.mulf %10, %7 : vector<64x128xf32>
    %12 = arith.select %9, %7, %11 : vector<64x128xi1>, vector<64x128xf32>
    %c0_6 = arith.constant 0 : index
    %c0_7 = arith.constant 0 : index
    %13 = vector.load %arg4[%c0_6, %c0_7] : memref<64x128xf32, #tpu.memory_space<vmem>>, vector<64x128xf32>
    tpu.vector_store %arg4[%c0_6, %c0_7], %12 {strides = array<i32>} : memref<64x128xf32, #tpu.memory_space<vmem>>, vector<64x128xf32>,
    return
  }
  func.func @transform_0(%arg0: i32) -> (i32, i32) {
    %c0_i32 = arith.constant 0 : i32
    %c0_i32_0 = arith.constant 0 : i32
    return %arg0, %c0_i32 : i32, i32
  }
  func.func @transform_1(%arg0: i32) -> (i32, i32) {
    %c0_i32 = arith.constant 0 : i32
    %c0_i32_0 = arith.constant 0 : i32
    %c0_i32_1 = arith.constant 0 : i32
    return %c0_i32, %c0_i32_0 : i32, i32
  }
  func.func @transform_2(%arg0: i32) -> (i32, i32) {
    %c0_i32 = arith.constant 0 : i32
    %c0_i32_0 = arith.constant 0 : i32
    %c0_i32_1 = arith.constant 0 : i32
    return %c0_i32, %c0_i32_0 : i32, i32
  }
  func.func @transform_3(%arg0: i32) -> (i32, i32) {
    %c0_i32 = arith.constant 0 : i32
    %c0_i32_0 = arith.constant 0 : i32
    return %arg0, %c0_i32 : i32, i32
  }
}

</mosaic_0001>

<llo_original>
// kernel: down_forward.3
$region0: #{down_forward.3}
  #allocation0 [shape = 'u32[]', space=smem, size = 0x4, offset = 0x4, fixed_abs, tag = 'smem constant byte address 0x4 - core index']
  #allocation1 [shape = 'u32[144,128]{1,0:T(1,128)}', space=vmem, size = 0x12000, scoped, tag = 'internal scratch']
  %s0 = inlined_call_operand.vmem [shape: bf16[128,128], index: 0, kind: input, shape index: {}]
  %s1 = inlined_call_operand.vmem [shape: f32[1,128], index: 1, kind: input, shape index: {}]
  %s2 = inlined_call_operand.vmem [shape: f32[1,128], index: 2, kind: input, shape index: {}]
  %s3 = inlined_call_operand.vmem [shape: f32[128,128], index: 3, kind: output, shape index: {}]
  %s4 = sld [smem:[#allocation0]]
  $region45: #{down_forward.3} parent=0
    _
  %s6 = ssub.s32 1, %s4
  %s7 = scalar_select 0, %s6, %s4
  loop: start=0, step=1, limit=4
  $region2: #{down_forward.3} parent=0 // loop_pre_header
    _
  $region3: #{down_forward.3} parent=0 // loop_header
    %s9 = sphi 0, %s13
    %p10 = scmp.ge.s32.totalorder %s9, 4
    %s19 = sphi 0, %s21
    %s22 = sphi 0, %s19
    %s23 = sphi 0, %s22
    %s39 = sphi 0, %s23
    %s43 = sphi 0, %s43
    %s45 = sphi 0, %s43
    %s46 = sphi 0, %s45
    %s60 = sphi 0, %s46
    %s64 = sphi 0, %s64
    %s66 = sphi 0, %s64
    %s67 = sphi 0, %s66
    %s81 = sphi 0, %s67
    %s87 = sphi 0, %s89
    %s90 = sphi 0, %s87
    %s91 = sphi 0, %s90
    %s107 = sphi 0, %s91
  $region4: #{down_forward.3} parent=0 // loop_header_branch
    %12 = sbr.rel (%p10) target = $region8
  $region5: #{down_forward.3} parent=0 // loop_body
    %s14 = ssub.s32 %s9, 1
    %s15 = ssub.s32 %s9, 2
    %s16 = sadd.s32 %s9, 1
    %s17 = ssub.s32 %s9, %s16
    %p18 = scmp.eq.s32.totalorder %s17, 0
    %s20 = sadd.s32 %s19, 1
    %s21 = scalar_select %p18, %s19, %s20
    %p24 = pneg %p18
    %p25 = scmp.eq.s32.totalorder %s9, 1
    %p26 = por %p24, %p25
    %p27 = scmp.ne.s32.totalorder %s19, %s22
    %p28 = scmp.eq.s32.totalorder %s9, 0
    %p29 = por %p27, %p28
    %p30 = scmp.ne.s32.totalorder %s19, %s22
    %p31 = scmp.eq.s32.totalorder %s14, 1
    %p32 = por %p30, %p31
    %p33 = scmp.ne.s32.totalorder %s22, %s23
    %p34 = scmp.eq.s32.totalorder %s14, 0
    %p35 = por %p33, %p34
    %p36 = scmp.ne.s32.totalorder %s22, %s23
    %p37 = scmp.eq.s32.totalorder %s15, 1
    %p38 = por %p36, %p37
    %p40 = scmp.ne.s32.totalorder %s23, %s39
    %p41 = scmp.eq.s32.totalorder %s15, 0
    %p42 = por %p40, %p41
    %s44 = sadd.s32 %s43, 1
    %p47 = scmp.eq.s32.totalorder %s9, 1
    %p48 = scmp.ne.s32.totalorder %s43, %s45
    %p49 = scmp.eq.s32.totalorder %s9, 0
    %p50 = por %p48, %p49
    %p51 = scmp.ne.s32.totalorder %s43, %s45
    %p52 = scmp.eq.s32.totalorder %s14, 1
    %p53 = por %p51, %p52
    %p54 = scmp.ne.s32.totalorder %s45, %s46
    %p55 = scmp.eq.s32.totalorder %s14, 0
    %p56 = por %p54, %p55
    %p57 = scmp.ne.s32.totalorder %s45, %s46
    %p58 = scmp.eq.s32.totalorder %s15, 1
    %p59 = por %p57, %p58
    %p61 = scmp.ne.s32.totalorder %s46, %s60
    %p62 = scmp.eq.s32.totalorder %s15, 0
    %p63 = por %p61, %p62
    %s65 = sadd.s32 %s64, 1
    %p68 = scmp.eq.s32.totalorder %s9, 1
    %p69 = scmp.ne.s32.totalorder %s64, %s66
    %p70 = scmp.eq.s32.totalorder %s9, 0
    %p71 = por %p69, %p70
    %p72 = scmp.ne.s32.totalorder %s64, %s66
    %p73 = scmp.eq.s32.totalorder %s14, 1
    %p74 = por %p72, %p73
    %p75 = scmp.ne.s32.totalorder %s66, %s67
    %p76 = scmp.eq.s32.totalorder %s14, 0
    %p77 = por %p75, %p76
    %p78 = scmp.ne.s32.totalorder %s66, %s67
    %p79 = scmp.eq.s32.totalorder %s15, 1
    %p80 = por %p78, %p79
    %p82 = scmp.ne.s32.totalorder %s67, %s81
    %p83 = scmp.eq.s32.totalorder %s15, 0
    %p84 = por %p82, %p83
    %s85 = ssub.s32 %s9, %s16
    %p86 = scmp.eq.s32.totalorder %s85, 0
    %s88 = sadd.s32 %s87, 1
    %s89 = scalar_select %p86, %s87, %s88
    %p92 = pneg %p86
    %p93 = scmp.eq.s32.totalorder %s9, 1
    %p94 = por %p92, %p93
    %p95 = scmp.ne.s32.totalorder %s87, %s90
    %p96 = scmp.eq.s32.totalorder %s9, 0
    %p97 = por %p95, %p96
    %p98 = scmp.ne.s32.totalorder %s87, %s90
    %p99 = scmp.eq.s32.totalorder %s14, 1
    %p100 = por %p98, %p99
    %p101 = scmp.ne.s32.totalorder %s90, %s91
    %p102 = scmp.eq.s32.totalorder %s14, 0
    %p103 = por %p101, %p102
    %p104 = scmp.ne.s32.totalorder %s90, %s91
    %p105 = scmp.eq.s32.totalorder %s15, 1
    %p106 = por %p104, %p105
    %p108 = scmp.ne.s32.totalorder %s91, %s107
    %p109 = scmp.eq.s32.totalorder %s15, 0
    %p110 = por %p108, %p109
    %p111 = scmp.le.s32.totalorder 1, %s9
    %p112 = scmp.lt.s32.totalorder %s9, 3
    %p113 = pnand %p111, %p112
    %p114 = pneg %p113
    // Predicated region
    $region9: #{down_forward.3} parent=5 // pred_check
      _
    $region10: #{down_forward.3} parent=5 // pred_check_branch
      %116 = sbr.rel (%p113) target = $region12
    $region11: #{down_forward.3} parent=5 // pred_region
      %s117 = ssub.s32 %s9, 1
      // Predicated region
      $region13: #{down_forward.3} parent=11 // pred_check
        %p118 = pneg %p56
      $region14: #{down_forward.3} parent=11 // pred_check_branch
        %120 = sbr.rel (%p118) target = $region16
      $region15: #{down_forward.3} parent=11 // pred_region
        _
      $region16: #{down_forward.3} parent=11 // pred_fallthru
        _
      // Predicated region
      $region17: #{down_forward.3} parent=11 // pred_check
        %p121 = pneg %p77
      $region18: #{down_forward.3} parent=11 // pred_check_branch
        %123 = sbr.rel (%p121) target = $region20
      $region19: #{down_forward.3} parent=11 // pred_region
        _
      $region20: #{down_forward.3} parent=11 // pred_fallthru
        _
    $region12: #{down_forward.3} parent=5 // pred_fallthru
      _
    %p124 = scmp.lt.s32.totalorder %s9, 2
    // Predicated region
    $region21: #{down_forward.3} parent=5 // pred_check
      %p125 = pneg %p124
    $region22: #{down_forward.3} parent=5 // pred_check_branch
      %127 = sbr.rel (%p125) target = $region24
    $region23: #{down_forward.3} parent=5 // pred_region
      // Predicated region
      $region25: #{down_forward.3} parent=23 // pred_check
        %p128 = pneg %p29
      $region26: #{down_forward.3} parent=23 // pred_check_branch
        %130 = sbr.rel (%p128) target = $region28
      $region27: #{down_forward.3} parent=23 // pred_region
        %s131 = smul.u32 8, %s9
        %p132 = scmp.lt.s32.totalorder %s131, 15
        %s133 = scalar_select %p132, %s131, 15
        %s134 = smul.addr %s133, 4
        %s135 = scalar_lea.vmem %s0, %s134
        %s136 = smul.u32 8, %s9
      $region28: #{down_forward.3} parent=23 // pred_fallthru
        _
    $region24: #{down_forward.3} parent=5 // pred_fallthru
      _
    %p137 = scmp.le.s32.totalorder 1, %s9
    %p138 = scmp.lt.s32.totalorder %s9, 3
    %p139 = pnand %p137, %p138
    %p140 = pneg %p139
    // Predicated region
    $region29: #{down_forward.3} parent=5 // pred_check
      _
    $region30: #{down_forward.3} parent=5 // pred_check_branch
      %142 = sbr.rel (%p139) target = $region32
    $region31: #{down_forward.3} parent=5 // pred_region
      %s143 = ssub.s32 %s9, 1
      %s144 = smul.u32 8, %s14
      %p145 = scmp.lt.s32.totalorder %s144, 15
      %s146 = scalar_select %p145, %s144, 15
      %s147 = smul.addr %s146, 4
      %s148 = scalar_lea.vmem %s0, %s147
      %p149 = pneg %p35
      %p150 = pneg %p32
      %p151 = pneg %p56
      %p152 = pneg %p53
      %p153 = pneg %p77
      %p154 = pneg %p74
      %p155 = pneg %p103
      %p156 = pneg %p100
      %s157 = smul.u32 8, %s14
      %p158 = scmp.lt.s32.totalorder %s157, 15
      %s159 = scalar_select %p158, %s157, 15
      %s160 = smul.addr %s159, 8
      %s161 = scalar_lea.vmem %s3, %s160
      %s162 = smul.u32 8, %s14
      %p163 = scmp.lt.s32.totalorder %s162, 15
      %s164 = scalar_select %p163, %s162, 15
      %s165 = smul.addr %s164, 4
      %s166 = scalar_lea.vmem %s0, %s165
      %s167 = smul.u32 8, %s14
      %s168 = smul.u32 8, %s14
      %p169 = scmp.lt.s32.totalorder %s168, 15
      %s170 = scalar_select %p169, %s168, 15
      %s171 = smul.addr %s170, 8
      %s172 = scalar_lea.vmem %s3, %s171
      %s173 = smul.u32 8, %s14
      %v174 = vld [vmem:[%s166] sm:$0xf]
      %v175 = vld [vmem:[%s166 + $0x4] sm:$0xf]
      %v176 = vld [vmem:[%s166 + $0x8] sm:$0xf]
      %v177 = vld [vmem:[%s166 + $0xc] sm:$0xf]
      %v178 = vld [vmem:[%s166 + $0x10] sm:$0xf]
      %v179 = vld [vmem:[%s166 + $0x14] sm:$0xf]
      %v180 = vld [vmem:[%s166 + $0x18] sm:$0xf]
      %v181 = vld [vmem:[%s166 + $0x1c] sm:$0xf]
      %v182 = vunpack.c.l.bf16 %v174
      %v183 = vunpack.c.l.bf16 %v175
      %v184 = vunpack.c.l.bf16 %v176
      %v185 = vunpack.c.l.bf16 %v177
      %v186 = vunpack.c.l.bf16 %v178
      %v187 = vunpack.c.l.bf16 %v179
      %v188 = vunpack.c.l.bf16 %v180
      %v189 = vunpack.c.l.bf16 %v181
      %v190 = vld [vmem:[%s1] sm:$0x1]
      %v192 = vlaneseq
      %v193 = vshrl.u32 %v192, 7
      %v194 = vsub.s32 0, %v193
      %v195 = vrot.slane %v190, %v194
      %v197 = vmul.f32 %v182, %v195
      %v198 = vmul.f32 %v183, %v195
      %v199 = vmul.f32 %v184, %v195
      %v200 = vmul.f32 %v185, %v195
      %v201 = vmul.f32 %v186, %v195
      %v202 = vmul.f32 %v187, %v195
      %v203 = vmul.f32 %v188, %v195
      %v204 = vmul.f32 %v189, %v195
      %v205 = vld [vmem:[%s2] sm:$0x1]
      %v207 = vlaneseq
      %v208 = vshrl.u32 %v207, 7
      %v209 = vsub.s32 0, %v208
      %v210 = vrot.slane %v205, %v209
      %v212 = vadd.f32 %v197, %v210
      %v213 = vadd.f32 %v198, %v210
      %v214 = vadd.f32 %v199, %v210
      %v215 = vadd.f32 %v200, %v210
      %v216 = vadd.f32 %v201, %v210
      %v217 = vadd.f32 %v202, %v210
      %v218 = vadd.f32 %v203, %v210
      %v219 = vadd.f32 %v204, %v210
      %vm220 = vcmp.ge.f32.partialorder %v212, 0.0
      %vm221 = vcmp.ge.f32.partialorder %v213, 0.0
      %vm222 = vcmp.ge.f32.partialorder %v214, 0.0
      %vm223 = vcmp.ge.f32.partialorder %v215, 0.0
      %vm224 = vcmp.ge.f32.partialorder %v216, 0.0
      %vm225 = vcmp.ge.f32.partialorder %v217, 0.0
      %vm226 = vcmp.ge.f32.partialorder %v218, 0.0
      %vm227 = vcmp.ge.f32.partialorder %v219, 0.0
      %v228 = vmul.f32 %v212, 0.2
      %v229 = vmul.f32 %v213, 0.2
      %v230 = vmul.f32 %v214, 0.2
      %v231 = vmul.f32 %v215, 0.2
      %v232 = vmul.f32 %v216, 0.2
      %v233 = vmul.f32 %v217, 0.2
      %v234 = vmul.f32 %v218, 0.2
      %v235 = vmul.f32 %v219, 0.2
      %v236 = vsel %vm220, %v212, %v228
      %v237 = vsel %vm221, %v213, %v229
      %v238 = vsel %vm222, %v214, %v230
      %v239 = vsel %vm223, %v215, %v231
      %v240 = vsel %vm224, %v216, %v232
      %v241 = vsel %vm225, %v217, %v233
      %v242 = vsel %vm226, %v218, %v234
      %v243 = vsel %vm227, %v219, %v235
      %244 = vst [vmem:[%s172] sm:$0xff] %v236
      %245 = vst [vmem:[%s172 + $0x8] sm:$0xff] %v237
      %246 = vst [vmem:[%s172 + $0x10] sm:$0xff] %v238
      %247 = vst [vmem:[%s172 + $0x18] sm:$0xff] %v239
      %248 = vst [vmem:[%s172 + $0x20] sm:$0xff] %v240
      %249 = vst [vmem:[%s172 + $0x28] sm:$0xff] %v241
      %250 = vst [vmem:[%s172 + $0x30] sm:$0xff] %v242
      %251 = vst [vmem:[%s172 + $0x38] sm:$0xff] %v243
      %s252 = smul.u32 8, %s14
      %p253 = scmp.lt.s32.totalorder %s252, 15
      %s254 = scalar_select %p253, %s252, 15
      %s255 = smul.addr %s254, 8
      %s256 = scalar_lea.vmem %s3, %s255
      // Predicated region
      $region33: #{down_forward.3} parent=31 // pred_check
        %p257 = pneg %p100
      $region34: #{down_forward.3} parent=31 // pred_check_branch
        %259 = sbr.rel (%p257) target = $region36
      $region35: #{down_forward.3} parent=31 // pred_region
        %s260 = smul.u32 8, %s14
      $region36: #{down_forward.3} parent=31 // pred_fallthru
        _
    $region32: #{down_forward.3} parent=5 // pred_fallthru
      _
    %p261 = scmp.le.s32.totalorder 2, %s9
    // Predicated region
    $region37: #{down_forward.3} parent=5 // pred_check
      %p262 = pneg %p261
    $region38: #{down_forward.3} parent=5 // pred_check_branch
      %264 = sbr.rel (%p262) target = $region40
    $region39: #{down_forward.3} parent=5 // pred_region
      %s265 = ssub.s32 %s9, 2
      // Predicated region
      $region41: #{down_forward.3} parent=39 // pred_check
        %p266 = pneg %p106
      $region42: #{down_forward.3} parent=39 // pred_check_branch
        %268 = sbr.rel (%p266) target = $region44
      $region43: #{down_forward.3} parent=39 // pred_region
        %s269 = smul.u32 8, %s15
        %p270 = scmp.lt.s32.totalorder %s269, 15
        %s271 = scalar_select %p270, %s269, 15
        %s272 = smul.addr %s271, 8
        %s273 = scalar_lea.vmem %s3, %s272
      $region44: #{down_forward.3} parent=39 // pred_fallthru
        _
    $region40: #{down_forward.3} parent=5 // pred_fallthru
      _
  $region6: #{down_forward.3} parent=0 // loop_footer
    %s13 = sadd.s32 1, %s9
  $region7: #{down_forward.3} parent=0 // loop_footer_branch
    %8 = sbr.rel target = $region3
  $region8: #{down_forward.3} parent=0 // loop_exit
    _

// kernel: down_forward.2
$region0: #{down_forward.2}
  #allocation0 [shape = 'u32[]', space=smem, size = 0x4, offset = 0x4, fixed_abs, tag = 'smem constant byte address 0x4 - core index']
  #allocation1 [shape = 'u32[144,128]{1,0:T(1,128)}', space=vmem, size = 0x12000, scoped, tag = 'internal scratch']
  %s0 = inlined_call_operand.vmem [shape: bf16[16,9,16], index: 0, kind: input, shape index: {}]
  %s1 = inlined_call_operand.vmem [shape: bf16[16,9,16], index: 1, kind: input, shape index: {}]
  %s2 = inlined_call_operand.vmem [shape: bf16[4,16,128], index: 2, kind: input, shape index: {}]
  %s3 = inlined_call_operand.vmem [shape: bf16[128,128], index: 3, kind: output, shape index: {0}]
  %s4 = inlined_call_operand.vmem [shape: f32[2,1,128], index: 4, kind: output, shape index: {1}]
  %s5 = inlined_call_operand.vmem [shape: f32[2,1,128], index: 5, kind: output, shape index: {2}]
  %6 = xla_tuple %s3, %s4, %s5
  %s7 = sld [smem:[#allocation0]]
  $region61: #{down_forward.2} parent=0
    _
  %s9 = ssub.s32 1, %s7
  %s10 = scalar_select 0, %s9, %s7
  loop: start=0, step=1, limit=4
  $region2: #{down_forward.2} parent=0 // loop_pre_header
    _
  $region3: #{down_forward.2} parent=0 // loop_header
    %s12 = sphi 0, %s16
    %p13 = scmp.ge.s32.totalorder %s12, 4
    %s22 = sphi 0, %s24
    %s25 = sphi 0, %s22
    %s26 = sphi 0, %s25
    %s42 = sphi 0, %s26
    %s48 = sphi 0, %s50
    %s51 = sphi 0, %s48
    %s52 = sphi 0, %s51
    %s68 = sphi 0, %s52
    %s72 = sphi 0, %s72
    %s74 = sphi 0, %s72
    %s75 = sphi 0, %s74
    %s89 = sphi 0, %s75
    %s95 = sphi 0, %s97
    %s98 = sphi 0, %s95
    %s99 = sphi 0, %s98
    %s115 = sphi 0, %s99
    %s121 = sphi 0, %s123
    %s124 = sphi 0, %s121
    %s125 = sphi 0, %s124
    %s141 = sphi 0, %s125
    %s147 = sphi 0, %s149
    %s150 = sphi 0, %s147
    %s151 = sphi 0, %s150
    %s167 = sphi 0, %s151
  $region4: #{down_forward.2} parent=0 // loop_header_branch
    %15 = sbr.rel (%p13) target = $region8
  $region5: #{down_forward.2} parent=0 // loop_body
    %s17 = ssub.s32 %s12, 1
    %s18 = ssub.s32 %s12, 2
    %s19 = sadd.s32 %s12, 1
    %s20 = ssub.s32 %s12, %s19
    %p21 = scmp.eq.s32.totalorder %s20, 0
    %s23 = sadd.s32 %s22, 1
    %s24 = scalar_select %p21, %s22, %s23
    %p27 = pneg %p21
    %p28 = scmp.eq.s32.totalorder %s12, 1
    %p29 = por %p27, %p28
    %p30 = scmp.ne.s32.totalorder %s22, %s25
    %p31 = scmp.eq.s32.totalorder %s12, 0
    %p32 = por %p30, %p31
    %p33 = scmp.ne.s32.totalorder %s22, %s25
    %p34 = scmp.eq.s32.totalorder %s17, 1
    %p35 = por %p33, %p34
    %p36 = scmp.ne.s32.totalorder %s25, %s26
    %p37 = scmp.eq.s32.totalorder %s17, 0
    %p38 = por %p36, %p37
    %p39 = scmp.ne.s32.totalorder %s25, %s26
    %p40 = scmp.eq.s32.totalorder %s18, 1
    %p41 = por %p39, %p40
    %p43 = scmp.ne.s32.totalorder %s26, %s42
    %p44 = scmp.eq.s32.totalorder %s18, 0
    %p45 = por %p43, %p44
    %s46 = ssub.s32 %s12, %s19
    %p47 = scmp.eq.s32.totalorder %s46, 0
    %s49 = sadd.s32 %s48, 1
    %s50 = scalar_select %p47, %s48, %s49
    %p53 = pneg %p47
    %p54 = scmp.eq.s32.totalorder %s12, 1
    %p55 = por %p53, %p54
    %p56 = scmp.ne.s32.totalorder %s48, %s51
    %p57 = scmp.eq.s32.totalorder %s12, 0
    %p58 = por %p56, %p57
    %p59 = scmp.ne.s32.totalorder %s48, %s51
    %p60 = scmp.eq.s32.totalorder %s17, 1
    %p61 = por %p59, %p60
    %p62 = scmp.ne.s32.totalorder %s51, %s52
    %p63 = scmp.eq.s32.totalorder %s17, 0
    %p64 = por %p62, %p63
    %p65 = scmp.ne.s32.totalorder %s51, %s52
    %p66 = scmp.eq.s32.totalorder %s18, 1
    %p67 = por %p65, %p66
    %p69 = scmp.ne.s32.totalorder %s52, %s68
    %p70 = scmp.eq.s32.totalorder %s18, 0
    %p71 = por %p69, %p70
    %s73 = sadd.s32 %s72, 1
    %p76 = scmp.eq.s32.totalorder %s12, 1
    %p77 = scmp.ne.s32.totalorder %s72, %s74
    %p78 = scmp.eq.s32.totalorder %s12, 0
    %p79 = por %p77, %p78
    %p80 = scmp.ne.s32.totalorder %s72, %s74
    %p81 = scmp.eq.s32.totalorder %s17, 1
    %p82 = por %p80, %p81
    %p83 = scmp.ne.s32.totalorder %s74, %s75
    %p84 = scmp.eq.s32.totalorder %s17, 0
    %p85 = por %p83, %p84
    %p86 = scmp.ne.s32.totalorder %s74, %s75
    %p87 = scmp.eq.s32.totalorder %s18, 1
    %p88 = por %p86, %p87
    %p90 = scmp.ne.s32.totalorder %s75, %s89
    %p91 = scmp.eq.s32.totalorder %s18, 0
    %p92 = por %p90, %p91
    %s93 = ssub.s32 %s12, %s19
    %p94 = scmp.eq.s32.totalorder %s93, 0
    %s96 = sadd.s32 %s95, 1
    %s97 = scalar_select %p94, %s95, %s96
    %p100 = pneg %p94
    %p101 = scmp.eq.s32.totalorder %s12, 1
    %p102 = por %p100, %p101
    %p103 = scmp.ne.s32.totalorder %s95, %s98
    %p104 = scmp.eq.s32.totalorder %s12, 0
    %p105 = por %p103, %p104
    %p106 = scmp.ne.s32.totalorder %s95, %s98
    %p107 = scmp.eq.s32.totalorder %s17, 1
    %p108 = por %p106, %p107
    %p109 = scmp.ne.s32.totalorder %s98, %s99
    %p110 = scmp.eq.s32.totalorder %s17, 0
    %p111 = por %p109, %p110
    %p112 = scmp.ne.s32.totalorder %s98, %s99
    %p113 = scmp.eq.s32.totalorder %s18, 1
    %p114 = por %p112, %p113
    %p116 = scmp.ne.s32.totalorder %s99, %s115
    %p117 = scmp.eq.s32.totalorder %s18, 0
    %p118 = por %p116, %p117
    %s119 = ssub.s32 %s12, %s19
    %p120 = scmp.eq.s32.totalorder %s119, 0
    %s122 = sadd.s32 %s121, 1
    %s123 = scalar_select %p120, %s121, %s122
    %p126 = pneg %p120
    %p127 = scmp.eq.s32.totalorder %s12, 1
    %p128 = por %p126, %p127
    %p129 = scmp.ne.s32.totalorder %s121, %s124
    %p130 = scmp.eq.s32.totalorder %s12, 0
    %p131 = por %p129, %p130
    %p132 = scmp.ne.s32.totalorder %s121, %s124
    %p133 = scmp.eq.s32.totalorder %s17, 1
    %p134 = por %p132, %p133
    %p135 = scmp.ne.s32.totalorder %s124, %s125
    %p136 = scmp.eq.s32.totalorder %s17, 0
    %p137 = por %p135, %p136
    %p138 = scmp.ne.s32.totalorder %s124, %s125
    %p139 = scmp.eq.s32.totalorder %s18, 1
    %p140 = por %p138, %p139
    %p142 = scmp.ne.s32.totalorder %s125, %s141
    %p143 = scmp.eq.s32.totalorder %s18, 0
    %p144 = por %p142, %p143
    %s145 = ssub.s32 %s12, %s19
    %p146 = scmp.eq.s32.totalorder %s145, 0
    %s148 = sadd.s32 %s147, 1
    %s149 = scalar_select %p146, %s147, %s148
    %p152 = pneg %p146
    %p153 = scmp.eq.s32.totalorder %s12, 1
    %p154 = por %p152, %p153
    %p155 = scmp.ne.s32.totalorder %s147, %s150
    %p156 = scmp.eq.s32.totalorder %s12, 0
    %p157 = por %p155, %p156
    %p158 = scmp.ne.s32.totalorder %s147, %s150
    %p159 = scmp.eq.s32.totalorder %s17, 1
    %p160 = por %p158, %p159
    %p161 = scmp.ne.s32.totalorder %s150, %s151
    %p162 = scmp.eq.s32.totalorder %s17, 0
    %p163 = por %p161, %p162
    %p164 = scmp.ne.s32.totalorder %s150, %s151
    %p165 = scmp.eq.s32.totalorder %s18, 1
    %p166 = por %p164, %p165
    %p168 = scmp.ne.s32.totalorder %s151, %s167
    %p169 = scmp.eq.s32.totalorder %s18, 0
    %p170 = por %p168, %p169
    %p171 = scmp.le.s32.totalorder 1, %s12
    %p172 = scmp.lt.s32.totalorder %s12, 3
    %p173 = pnand %p171, %p172
    %p174 = pneg %p173
    // Predicated region
    $region9: #{down_forward.2} parent=5 // pred_check
      _
    $region10: #{down_forward.2} parent=5 // pred_check_branch
      %176 = sbr.rel (%p173) target = $region12
    $region11: #{down_forward.2} parent=5 // pred_region
      %s177 = ssub.s32 %s12, 1
      // Predicated region
      $region13: #{down_forward.2} parent=11 // pred_check
        %p178 = pneg %p85
      $region14: #{down_forward.2} parent=11 // pred_check_branch
        %180 = sbr.rel (%p178) target = $region16
      $region15: #{down_forward.2} parent=11 // pred_region
        _
      $region16: #{down_forward.2} parent=11 // pred_fallthru
        _
    $region12: #{down_forward.2} parent=5 // pred_fallthru
      _
    %p181 = scmp.lt.s32.totalorder %s12, 2
    // Predicated region
    $region17: #{down_forward.2} parent=5 // pred_check
      %p182 = pneg %p181
    $region18: #{down_forward.2} parent=5 // pred_check_branch
      %184 = sbr.rel (%p182) target = $region20
    $region19: #{down_forward.2} parent=5 // pred_region
      // Predicated region
      $region21: #{down_forward.2} parent=19 // pred_check
        %p185 = pneg %p32
      $region22: #{down_forward.2} parent=19 // pred_check_branch
        %187 = sbr.rel (%p185) target = $region24
      $region23: #{down_forward.2} parent=19 // pred_region
        %s188 = smul.u32 8, %s12
        %p189 = scmp.lt.s32.totalorder %s188, 15
        %s190 = scalar_select %p189, %s188, 15
        %s191 = smul.addr %s190, 2
        %s192 = smul.addr %s191, 4
        %s193 = scalar_lea.vmem %s0, %s192
        %s194 = smul.u32 8, %s12
      $region24: #{down_forward.2} parent=19 // pred_fallthru
        _
      // Predicated region
      $region25: #{down_forward.2} parent=19 // pred_check
        %p195 = pneg %p58
      $region26: #{down_forward.2} parent=19 // pred_check_branch
        %197 = sbr.rel (%p195) target = $region28
      $region27: #{down_forward.2} parent=19 // pred_region
        %s198 = smul.u32 8, %s12
        %p199 = scmp.lt.s32.totalorder %s198, 15
        %s200 = scalar_select %p199, %s198, 15
        %s201 = smul.addr %s200, 2
        %s202 = smul.addr %s201, 4
        %s203 = scalar_lea.vmem %s1, %s202
        %s204 = smul.u32 8, %s12
      $region28: #{down_forward.2} parent=19 // pred_fallthru
        _
    $region20: #{down_forward.2} parent=5 // pred_fallthru
      _
    %p205 = scmp.le.s32.totalorder 1, %s12
    %p206 = scmp.lt.s32.totalorder %s12, 3
    %p207 = pnand %p205, %p206
    %p208 = pneg %p207
    // Predicated region
    $region29: #{down_forward.2} parent=5 // pred_check
      _
    $region30: #{down_forward.2} parent=5 // pred_check_branch
      %210 = sbr.rel (%p207) target = $region32
    $region31: #{down_forward.2} parent=5 // pred_region
      %s211 = ssub.s32 %s12, 1
      %s212 = smul.u32 8, %s17
      %p213 = scmp.lt.s32.totalorder %s212, 15
      %s214 = scalar_select %p213, %s212, 15
      %s215 = smul.addr %s214, 2
      %s216 = smul.addr %s215, 4
      %s217 = scalar_lea.vmem %s0, %s216
      %p218 = pneg %p38
      %p219 = pneg %p35
      %s220 = smul.u32 8, %s17
      %p221 = scmp.lt.s32.totalorder %s220, 15
      %s222 = scalar_select %p221, %s220, 15
      %s223 = smul.addr %s222, 2
      %s224 = smul.addr %s223, 4
      %s225 = scalar_lea.vmem %s1, %s224
      %p226 = pneg %p64
      %p227 = pneg %p61
      %p228 = pneg %p85
      %p229 = pneg %p82
      %p230 = pneg %p111
      %p231 = pneg %p108
      %s232 = smul.u32 8, %s17
      %p233 = scmp.lt.s32.totalorder %s232, 15
      %s234 = scalar_select %p233, %s232, 15
      %s235 = smul.addr %s234, 4
      %s236 = scalar_lea.vmem %s3, %s235
      %p237 = pneg %p137
      %p238 = pneg %p134
      %p239 = scmp.lt.s32.totalorder %s17, 1
      %s240 = scalar_select %p239, %s17, 1
      %s241 = scalar_lea.vmem %s4, %s240
      %p242 = pneg %p163
      %p243 = pneg %p160
      %p244 = scmp.lt.s32.totalorder %s17, 1
      %s245 = scalar_select %p244, %s17, 1
      %s246 = scalar_lea.vmem %s5, %s245
      %s247 = smul.u32 8, %s17
      %p248 = scmp.lt.s32.totalorder %s247, 15
      %s249 = scalar_select %p248, %s247, 15
      %s250 = smul.addr %s249, 2
      %s251 = smul.addr %s250, 4
      %s252 = scalar_lea.vmem %s0, %s251
      %s253 = smul.u32 8, %s17
      %s254 = smul.u32 8, %s17
      %p255 = scmp.lt.s32.totalorder %s254, 15
      %s256 = scalar_select %p255, %s254, 15
      %s257 = smul.addr %s256, 2
      %s258 = smul.addr %s257, 4
      %s259 = scalar_lea.vmem %s1, %s258
      %s260 = smul.u32 8, %s17
      %s261 = smul.u32 8, %s17
      %p262 = scmp.lt.s32.totalorder %s261, 15
      %s263 = scalar_select %p262, %s261, 15
      %s264 = smul.addr %s263, 4
      %s265 = scalar_lea.vmem %s3, %s264
      %s266 = smul.u32 8, %s17
      %p267 = scmp.lt.s32.totalorder %s17, 1
      %s268 = scalar_select %p267, %s17, 1
      %s269 = scalar_lea.vmem %s4, %s268
      %p270 = scmp.lt.s32.totalorder %s17, 1
      %s271 = scalar_select %p270, %s17, 1
      %s272 = scalar_lea.vmem %s5, %s271
      %v274 = vld [vmem:[%s252] sm:$0xf]
      %v275 = vld [vmem:[%s252 + $0x4] sm:$0x1]
      %v276 = vld [vmem:[%s252 + $0x8] sm:$0xf]
      %v277 = vld [vmem:[%s252 + $0xc] sm:$0x1]
      %v278 = vld [vmem:[%s252 + $0x10] sm:$0xf]
      %v279 = vld [vmem:[%s252 + $0x14] sm:$0x1]
      %v280 = vld [vmem:[%s252 + $0x18] sm:$0xf]
      %v281 = vld [vmem:[%s252 + $0x1c] sm:$0x1]
      %v282 = vld [vmem:[%s252 + $0x20] sm:$0xf]
      %v283 = vld [vmem:[%s252 + $0x24] sm:$0x1]
      %v284 = vld [vmem:[%s252 + $0x28] sm:$0xf]
      %v285 = vld [vmem:[%s252 + $0x2c] sm:$0x1]
      %v286 = vld [vmem:[%s252 + $0x30] sm:$0xf]
      %v287 = vld [vmem:[%s252 + $0x34] sm:$0x1]
      %v288 = vld [vmem:[%s252 + $0x38] sm:$0xf]
      %v289 = vld [vmem:[%s252 + $0x3c] sm:$0x1]
      %v290 = vld [vmem:[%s259] sm:$0xf]
      %v291 = vld [vmem:[%s259 + $0x4] sm:$0x1]
      %v292 = vld [vmem:[%s259 + $0x8] sm:$0xf]
      %v293 = vld [vmem:[%s259 + $0xc] sm:$0x1]
      %v294 = vld [vmem:[%s259 + $0x10] sm:$0xf]
      %v295 = vld [vmem:[%s259 + $0x14] sm:$0x1]
      %v296 = vld [vmem:[%s259 + $0x18] sm:$0xf]
      %v297 = vld [vmem:[%s259 + $0x1c] sm:$0x1]
      %v298 = vld [vmem:[%s259 + $0x20] sm:$0xf]
      %v299 = vld [vmem:[%s259 + $0x24] sm:$0x1]
      %v300 = vld [vmem:[%s259 + $0x28] sm:$0xf]
      %v301 = vld [vmem:[%s259 + $0x2c] sm:$0x1]
      %v302 = vld [vmem:[%s259 + $0x30] sm:$0xf]
      %v303 = vld [vmem:[%s259 + $0x34] sm:$0x1]
      %v304 = vld [vmem:[%s259 + $0x38] sm:$0xf]
      %v305 = vld [vmem:[%s259 + $0x3c] sm:$0x1]
      %vm306 = vsmask.f32 3328
      %vm307 = vsmask.f32 7440
      %vm308 = vmor %vm306, %vm307
      %v310 = vshrl.u32 %v274, 16
      %v312 = vrot.slane %v310, 4
      %v313 = vshll.u32 %v274, 16
      %v315 = vrot.slane %v313, 5
      %v316 = vor.u32 %v312, %v315
      %v317 = vrot.slane %v316, 4
      %v319 = vshll.u32 %v275, 16
      %v321 = vrot.slane %v319, 5
      %v322 = vsel %vm308, %v317, %v321
      %v324 = vshrl.u32 %v276, 16
      %v326 = vrot.slane %v324, 4
      %v327 = vshll.u32 %v276, 16
      %v329 = vrot.slane %v327, 5
      %v330 = vor.u32 %v326, %v329
      %v331 = vrot.slane %v330, 4
      %v333 = vshll.u32 %v277, 16
      %v335 = vrot.slane %v333, 5
      %v336 = vsel %vm308, %v331, %v335
      %v338 = vshrl.u32 %v278, 16
      %v340 = vrot.slane %v338, 4
      %v341 = vshll.u32 %v278, 16
      %v343 = vrot.slane %v341, 5
      %v344 = vor.u32 %v340, %v343
      %v345 = vrot.slane %v344, 4
      %v347 = vshll.u32 %v279, 16
      %v349 = vrot.slane %v347, 5
      %v350 = vsel %vm308, %v345, %v349
      %v352 = vshrl.u32 %v280, 16
      %v354 = vrot.slane %v352, 4
      %v355 = vshll.u32 %v280, 16
      %v357 = vrot.slane %v355, 5
      %v358 = vor.u32 %v354, %v357
      %v359 = vrot.slane %v358, 4
      %v361 = vshll.u32 %v281, 16
      %v363 = vrot.slane %v361, 5
      %v364 = vsel %vm308, %v359, %v363
      %v366 = vshrl.u32 %v282, 16
      %v368 = vrot.slane %v366, 4
      %v369 = vshll.u32 %v282, 16
      %v371 = vrot.slane %v369, 5
      %v372 = vor.u32 %v368, %v371
      %v373 = vrot.slane %v372, 4
      %v375 = vshll.u32 %v283, 16
      %v377 = vrot.slane %v375, 5
      %v378 = vsel %vm308, %v373, %v377
      %v380 = vshrl.u32 %v284, 16
      %v382 = vrot.slane %v380, 4
      %v383 = vshll.u32 %v284, 16
      %v385 = vrot.slane %v383, 5
      %v386 = vor.u32 %v382, %v385
      %v387 = vrot.slane %v386, 4
      %v389 = vshll.u32 %v285, 16
      %v391 = vrot.slane %v389, 5
      %v392 = vsel %vm308, %v387, %v391
      %v394 = vshrl.u32 %v286, 16
      %v396 = vrot.slane %v394, 4
      %v397 = vshll.u32 %v286, 16
      %v399 = vrot.slane %v397, 5
      %v400 = vor.u32 %v396, %v399
      %v401 = vrot.slane %v400, 4
      %v403 = vshll.u32 %v287, 16
      %v405 = vrot.slane %v403, 5
      %v406 = vsel %vm308, %v401, %v405
      %v408 = vshrl.u32 %v288, 16
      %v410 = vrot.slane %v408, 4
      %v411 = vshll.u32 %v288, 16
      %v413 = vrot.slane %v411, 5
      %v414 = vor.u32 %v410, %v413
      %v415 = vrot.slane %v414, 4
      %v417 = vshll.u32 %v289, 16
      %v419 = vrot.slane %v417, 5
      %v420 = vsel %vm308, %v415, %v419
      %v422 = vshrl.u32 %v290, 16
      %v424 = vrot.slane %v422, 4
      %v425 = vshll.u32 %v290, 16
      %v427 = vrot.slane %v425, 5
      %v428 = vor.u32 %v424, %v427
      %v429 = vrot.slane %v428, 4
      %v431 = vshll.u32 %v291, 16
      %v433 = vrot.slane %v431, 5
      %v434 = vsel %vm308, %v429, %v433
      %v436 = vshrl.u32 %v292, 16
      %v438 = vrot.slane %v436, 4
      %v439 = vshll.u32 %v292, 16
      %v441 = vrot.slane %v439, 5
      %v442 = vor.u32 %v438, %v441
      %v443 = vrot.slane %v442, 4
      %v445 = vshll.u32 %v293, 16
      %v447 = vrot.slane %v445, 5
      %v448 = vsel %vm308, %v443, %v447
      %v450 = vshrl.u32 %v294, 16
      %v452 = vrot.slane %v450, 4
      %v453 = vshll.u32 %v294, 16
      %v455 = vrot.slane %v453, 5
      %v456 = vor.u32 %v452, %v455
      %v457 = vrot.slane %v456, 4
      %v459 = vshll.u32 %v295, 16
      %v461 = vrot.slane %v459, 5
      %v462 = vsel %vm308, %v457, %v461
      %v464 = vshrl.u32 %v296, 16
      %v466 = vrot.slane %v464, 4
      %v467 = vshll.u32 %v296, 16
      %v469 = vrot.slane %v467, 5
      %v470 = vor.u32 %v466, %v469
      %v471 = vrot.slane %v470, 4
      %v473 = vshll.u32 %v297, 16
      %v475 = vrot.slane %v473, 5
      %v476 = vsel %vm308, %v471, %v475
      %v478 = vshrl.u32 %v298, 16
      %v480 = vrot.slane %v478, 4
      %v481 = vshll.u32 %v298, 16
      %v483 = vrot.slane %v481, 5
      %v484 = vor.u32 %v480, %v483
      %v485 = vrot.slane %v484, 4
      %v487 = vshll.u32 %v299, 16
      %v489 = vrot.slane %v487, 5
      %v490 = vsel %vm308, %v485, %v489
      %v492 = vshrl.u32 %v300, 16
      %v494 = vrot.slane %v492, 4
      %v495 = vshll.u32 %v300, 16
      %v497 = vrot.slane %v495, 5
      %v498 = vor.u32 %v494, %v497
      %v499 = vrot.slane %v498, 4
      %v501 = vshll.u32 %v301, 16
      %v503 = vrot.slane %v501, 5
      %v504 = vsel %vm308, %v499, %v503
      %v506 = vshrl.u32 %v302, 16
      %v508 = vrot.slane %v506, 4
      %v509 = vshll.u32 %v302, 16
      %v511 = vrot.slane %v509, 5
      %v512 = vor.u32 %v508, %v511
      %v513 = vrot.slane %v512, 4
      %v515 = vshll.u32 %v303, 16
      %v517 = vrot.slane %v515, 5
      %v518 = vsel %vm308, %v513, %v517
      %v520 = vshrl.u32 %v304, 16
      %v522 = vrot.slane %v520, 4
      %v523 = vshll.u32 %v304, 16
      %v525 = vrot.slane %v523, 5
      %v526 = vor.u32 %v522, %v525
      %v527 = vrot.slane %v526, 4
      %v529 = vshll.u32 %v305, 16
      %v531 = vrot.slane %v529, 5
      %v532 = vsel %vm308, %v527, %v531
      %v533 = vld [vmem:[%s2] sm:$0xf]
      %v534 = vld [vmem:[%s2 + $0x4] sm:$0xf]
      %s535 = scalar_lea.vmem %s2, 8
      %v536 = vld [vmem:[%s535] sm:$0xf]
      %v537 = vld [vmem:[%s535 + $0x4] sm:$0xf]
      %v538 = vunpack.c.l.b16 %v322
      %v539 = vunpack.c.l.b16 %v336
      %v540 = vunpack.c.l.b16 %v350
      %v541 = vunpack.c.l.b16 %v364
      %v542 = vunpack.c.l.b16 %v378
      %v543 = vunpack.c.l.b16 %v392
      %v544 = vunpack.c.l.b16 %v406
      %v545 = vunpack.c.l.b16 %v420
      %v546 = vpack.c.b16 %v539, %v538
      %v547 = vpack.c.b16 %v541, %v540
      %v548 = vpack.c.b16 %v543, %v542
      %v549 = vpack.c.b16 %v545, %v544
      %v552 = vunpack.c.l.b16 %v536
      %v553 = vunpack.c.l.b16 %v537
      %v554 = vpack.c.b16 %v553, %v552
      %vm556 = vcmask 130048
      %v558 = vsel %vm556, %v546, 0
      %v561 = vsel %vm556, %v547, 0
      %v564 = vsel %vm556, %v548, 0
      %v567 = vsel %vm556, %v549, 0
      %569 = vmatprep.subr.bf16.mxu0 0
      %570 = vmatpush1.bf16.msra.mxu0 0
      %571 = vmatprep.subr.bf16.mxu0 0
      %572 = vmatpush1.bf16.msra.mxu0 0
      %573 = vmatprep.subr.bf16.mxu0 0
      %574 = vmatpush1.bf16.msra.mxu0 0
      %575 = vmatprep.subr.bf16.mxu0 0
      %576 = vmatpush1.bf16.msra.mxu0 0
      %577 = vmatprep.subr.bf16.mxu0 0
      %578 = vmatpush1.bf16.msra.mxu0 0
      %579 = vmatprep.subr.bf16.mxu0 0
      %580 = vmatpush1.bf16.msra.mxu0 0
      %581 = vmatprep.subr.bf16.mxu0 0
      %582 = vmatpush1.bf16.msra.mxu0 0
      %583 = vmatprep.subr.bf16.mxu0 0
      %584 = vmatpush1.bf16.msra.mxu0 %v554
      %585 = vmatprep.subr.bf16.mxu0 0
      %586 = vmatpush2.bf16.msra.mxu0 0
      %587 = vmatprep.subr.bf16.mxu0 0
      %588 = vmatpush2.bf16.msra.mxu0 0
      %589 = vmatprep.subr.bf16.mxu0 0
      %590 = vmatpush2.bf16.msra.mxu0 0
      %591 = vmatprep.subr.bf16.mxu0 0
      %592 = vmatpush2.bf16.msra.mxu0 0
      %593 = vmatprep.subr.bf16.mxu0 0
      %594 = vmatpush2.bf16.msra.mxu0 0
      %595 = vmatprep.subr.bf16.mxu0 0
      %596 = vmatpush2.bf16.msra.mxu0 0
      %597 = vmatprep.subr.bf16.mxu0 0
      %598 = vmatpush2.bf16.msra.mxu0 0
      %599 = vmatprep.subr.bf16.mxu0 0
      %600 = vmatpush2.bf16.msra.mxu0 0
      %601 = vmatprep.mubr.bf16.mxu0 0
      %602 = vmatmul.mubr.bf16.gmra.mxu0 %v558
      %v603 = vpop.f32.mrf.mxu0
      %v604 = vadd.f32 0.0, %v603
      %v605 = vpop.f32.mrf.mxu0
      %v606 = vpop.f32.mrf.mxu0
      %v607 = vadd.f32 0.0, %v606
      %v608 = vpop.f32.mrf.mxu0
      %609 = vmatprep.mubr.bf16.mxu0 0
      %610 = vmatmul.mubr.bf16.gmra.mxu0 %v561
      %v611 = vpop.f32.mrf.mxu0
      %v612 = vadd.f32 0.0, %v611
      %v613 = vpop.f32.mrf.mxu0
      %v614 = vpop.f32.mrf.mxu0
      %v615 = vadd.f32 0.0, %v614
      %v616 = vpop.f32.mrf.mxu0
      %617 = vmatprep.mubr.bf16.mxu0 0
      %618 = vmatmul.mubr.bf16.gmra.mxu0 %v564
      %v619 = vpop.f32.mrf.mxu0
      %v620 = vadd.f32 0.0, %v619
      %v621 = vpop.f32.mrf.mxu0
      %v622 = vpop.f32.mrf.mxu0
      %v623 = vadd.f32 0.0, %v622
      %v624 = vpop.f32.mrf.mxu0
      %625 = vmatprep.mubr.bf16.mxu0 0
      %626 = vmatmul.mubr.bf16.gmra.mxu0 %v567
      %v627 = vpop.f32.mrf.mxu0
      %v628 = vadd.f32 0.0, %v627
      %v629 = vpop.f32.mrf.mxu0
      %v630 = vpop.f32.mrf.mxu0
      %v631 = vadd.f32 0.0, %v630
      %v632 = vpop.f32.mrf.mxu0
      %633 = vdwg.mxu0
      %v642 = vunpack.c.l.b16 %v274
      %v643 = vunpack.c.l.b16 %v276
      %v644 = vunpack.c.l.b16 %v278
      %v645 = vunpack.c.l.b16 %v280
      %v646 = vunpack.c.l.b16 %v282
      %v647 = vunpack.c.l.b16 %v284
      %v648 = vunpack.c.l.b16 %v286
      %v649 = vunpack.c.l.b16 %v288
      %v650 = vpack.c.b16 %v643, %v642
      %v651 = vpack.c.b16 %v645, %v644
      %v652 = vpack.c.b16 %v647, %v646
      %v653 = vpack.c.b16 %v649, %v648
      %v656 = vunpack.c.l.b16 %v533
      %v657 = vunpack.c.l.b16 %v534
      %v658 = vpack.c.b16 %v657, %v656
      %v661 = vsel %vm556, %v650, 0
      %v664 = vsel %vm556, %v651, 0
      %v667 = vsel %vm556, %v652, 0
      %v670 = vsel %vm556, %v653, 0
      %672 = vmatprep.subr.bf16.mxu0 0
      %673 = vmatpush1.bf16.msra.mxu0 0
      %674 = vmatprep.subr.bf16.mxu0 0
      %675 = vmatpush1.bf16.msra.mxu0 0
      %676 = vmatprep.subr.bf16.mxu0 0
      %677 = vmatpush1.bf16.msra.mxu0 0
      %678 = vmatprep.subr.bf16.mxu0 0
      %679 = vmatpush1.bf16.msra.mxu0 0
      %680 = vmatprep.subr.bf16.mxu0 0
      %681 = vmatpush1.bf16.msra.mxu0 0
      %682 = vmatprep.subr.bf16.mxu0 0
      %683 = vmatpush1.bf16.msra.mxu0 0
      %684 = vmatprep.subr.bf16.mxu0 0
      %685 = vmatpush1.bf16.msra.mxu0 0
      %686 = vmatprep.subr.bf16.mxu0 0
      %687 = vmatpush1.bf16.msra.mxu0 %v658
      %688 = vmatprep.subr.bf16.mxu0 0
      %689 = vmatpush2.bf16.msra.mxu0 0
      %690 = vmatprep.subr.bf16.mxu0 0
      %691 = vmatpush2.bf16.msra.mxu0 0
      %692 = vmatprep.subr.bf16.mxu0 0
      %693 = vmatpush2.bf16.msra.mxu0 0
      %694 = vmatprep.subr.bf16.mxu0 0
      %695 = vmatpush2.bf16.msra.mxu0 0
      %696 = vmatprep.subr.bf16.mxu0 0
      %697 = vmatpush2.bf16.msra.mxu0 0
      %698 = vmatprep.subr.bf16.mxu0 0
      %699 = vmatpush2.bf16.msra.mxu0 0
      %700 = vmatprep.subr.bf16.mxu0 0
      %701 = vmatpush2.bf16.msra.mxu0 0
      %702 = vmatprep.subr.bf16.mxu0 0
      %703 = vmatpush2.bf16.msra.mxu0 0
      %704 = vmatprep.mubr.bf16.mxu0 0
      %705 = vmatmul.mubr.bf16.gmra.mxu0 %v661
      %v706 = vpop.f32.mrf.mxu0
      %v707 = vadd.f32 %v604, %v706
      %v708 = vpop.f32.mrf.mxu0
      %v709 = vpop.f32.mrf.mxu0
      %v710 = vadd.f32 %v607, %v709
      %v711 = vpop.f32.mrf.mxu0
      %712 = vmatprep.mubr.bf16.mxu0 0
      %713 = vmatmul.mubr.bf16.gmra.mxu0 %v664
      %v714 = vpop.f32.mrf.mxu0
      %v715 = vadd.f32 %v612, %v714
      %v716 = vpop.f32.mrf.mxu0
      %v717 = vpop.f32.mrf.mxu0
      %v718 = vadd.f32 %v615, %v717
      %v719 = vpop.f32.mrf.mxu0
      %720 = vmatprep.mubr.bf16.mxu0 0
      %721 = vmatmul.mubr.bf16.gmra.mxu0 %v667
      %v722 = vpop.f32.mrf.mxu0
      %v723 = vadd.f32 %v620, %v722
      %v724 = vpop.f32.mrf.mxu0
      %v725 = vpop.f32.mrf.mxu0
      %v726 = vadd.f32 %v623, %v725
      %v727 = vpop.f32.mrf.mxu0
      %728 = vmatprep.mubr.bf16.mxu0 0
      %729 = vmatmul.mubr.bf16.gmra.mxu0 %v670
      %v730 = vpop.f32.mrf.mxu0
      %v731 = vadd.f32 %v628, %v730
      %v732 = vpop.f32.mrf.mxu0
      %v733 = vpop.f32.mrf.mxu0
      %v734 = vadd.f32 %v631, %v733
      %v735 = vpop.f32.mrf.mxu0
      %736 = vdwg.mxu0
      %s737 = scalar_lea.vmem %s2, 16
      %v738 = vld [vmem:[%s737] sm:$0xf]
      %v739 = vld [vmem:[%s737 + $0x4] sm:$0xf]
      %v748 = vunpack.c.l.b16 %v290
      %v749 = vunpack.c.l.b16 %v292
      %v750 = vunpack.c.l.b16 %v294
      %v751 = vunpack.c.l.b16 %v296
      %v752 = vunpack.c.l.b16 %v298
      %v753 = vunpack.c.l.b16 %v300
      %v754 = vunpack.c.l.b16 %v302
      %v755 = vunpack.c.l.b16 %v304
      %v756 = vpack.c.b16 %v749, %v748
      %v757 = vpack.c.b16 %v751, %v750
      %v758 = vpack.c.b16 %v753, %v752
      %v759 = vpack.c.b16 %v755, %v754
      %v762 = vunpack.c.l.b16 %v738
      %v763 = vunpack.c.l.b16 %v739
      %v764 = vpack.c.b16 %v763, %v762
      %v767 = vsel %vm556, %v756, 0
      %v770 = vsel %vm556, %v757, 0
      %v773 = vsel %vm556, %v758, 0
      %v776 = vsel %vm556, %v759, 0
      %778 = vmatprep.subr.bf16.mxu0 0
      %779 = vmatpush1.bf16.msra.mxu0 0
      %780 = vmatprep.subr.bf16.mxu0 0
      %781 = vmatpush1.bf16.msra.mxu0 0
      %782 = vmatprep.subr.bf16.mxu0 0
      %783 = vmatpush1.bf16.msra.mxu0 0
      %784 = vmatprep.subr.bf16.mxu0 0
      %785 = vmatpush1.bf16.msra.mxu0 0
      %786 = vmatprep.subr.bf16.mxu0 0
      %787 = vmatpush1.bf16.msra.mxu0 0
      %788 = vmatprep.subr.bf16.mxu0 0
      %789 = vmatpush1.bf16.msra.mxu0 0
      %790 = vmatprep.subr.bf16.mxu0 0
      %791 = vmatpush1.bf16.msra.mxu0 0
      %792 = vmatprep.subr.bf16.mxu0 0
      %793 = vmatpush1.bf16.msra.mxu0 %v764
      %794 = vmatprep.subr.bf16.mxu0 0
      %795 = vmatpush2.bf16.msra.mxu0 0
      %796 = vmatprep.subr.bf16.mxu0 0
      %797 = vmatpush2.bf16.msra.mxu0 0
      %798 = vmatprep.subr.bf16.mxu0 0
      %799 = vmatpush2.bf16.msra.mxu0 0
      %800 = vmatprep.subr.bf16.mxu0 0
      %801 = vmatpush2.bf16.msra.mxu0 0
      %802 = vmatprep.subr.bf16.mxu0 0
      %803 = vmatpush2.bf16.msra.mxu0 0
      %804 = vmatprep.subr.bf16.mxu0 0
      %805 = vmatpush2.bf16.msra.mxu0 0
      %806 = vmatprep.subr.bf16.mxu0 0
      %807 = vmatpush2.bf16.msra.mxu0 0
      %808 = vmatprep.subr.bf16.mxu0 0
      %809 = vmatpush2.bf16.msra.mxu0 0
      %810 = vmatprep.mubr.bf16.mxu0 0
      %811 = vmatmul.mubr.bf16.gmra.mxu0 %v767
      %v812 = vpop.f32.mrf.mxu0
      %v813 = vadd.f32 0.0, %v812
      %v814 = vpop.f32.mrf.mxu0
      %v815 = vpop.f32.mrf.mxu0
      %v816 = vadd.f32 0.0, %v815
      %v817 = vpop.f32.mrf.mxu0
      %818 = vmatprep.mubr.bf16.mxu0 0
      %819 = vmatmul.mubr.bf16.gmra.mxu0 %v770
      %v820 = vpop.f32.mrf.mxu0
      %v821 = vadd.f32 0.0, %v820
      %v822 = vpop.f32.mrf.mxu0
      %v823 = vpop.f32.mrf.mxu0
      %v824 = vadd.f32 0.0, %v823
      %v825 = vpop.f32.mrf.mxu0
      %826 = vmatprep.mubr.bf16.mxu0 0
      %827 = vmatmul.mubr.bf16.gmra.mxu0 %v773
      %v828 = vpop.f32.mrf.mxu0
      %v829 = vadd.f32 0.0, %v828
      %v830 = vpop.f32.mrf.mxu0
      %v831 = vpop.f32.mrf.mxu0
      %v832 = vadd.f32 0.0, %v831
      %v833 = vpop.f32.mrf.mxu0
      %834 = vmatprep.mubr.bf16.mxu0 0
      %835 = vmatmul.mubr.bf16.gmra.mxu0 %v776
      %v836 = vpop.f32.mrf.mxu0
      %v837 = vadd.f32 0.0, %v836
      %v838 = vpop.f32.mrf.mxu0
      %v839 = vpop.f32.mrf.mxu0
      %v840 = vadd.f32 0.0, %v839
      %v841 = vpop.f32.mrf.mxu0
      %842 = vdwg.mxu0
      %v843 = vadd.f32 %v707, %v813
      %v844 = vadd.f32 %v710, %v816
      %v845 = vadd.f32 %v715, %v821
      %v846 = vadd.f32 %v718, %v824
      %v847 = vadd.f32 %v723, %v829
      %v848 = vadd.f32 %v726, %v832
      %v849 = vadd.f32 %v731, %v837
      %v850 = vadd.f32 %v734, %v840
      %s851 = scalar_lea.vmem %s2, 24
      %v852 = vld [vmem:[%s851] sm:$0xf]
      %v853 = vld [vmem:[%s851 + $0x4] sm:$0xf]
      %v854 = vunpack.c.l.b16 %v434
      %v855 = vunpack.c.l.b16 %v448
      %v856 = vunpack.c.l.b16 %v462
      %v857 = vunpack.c.l.b16 %v476
      %v858 = vunpack.c.l.b16 %v490
      %v859 = vunpack.c.l.b16 %v504
      %v860 = vunpack.c.l.b16 %v518
      %v861 = vunpack.c.l.b16 %v532
      %v862 = vpack.c.b16 %v855, %v854
      %v863 = vpack.c.b16 %v857, %v856
      %v864 = vpack.c.b16 %v859, %v858
      %v865 = vpack.c.b16 %v861, %v860
      %v868 = vunpack.c.l.b16 %v852
      %v869 = vunpack.c.l.b16 %v853
      %v870 = vpack.c.b16 %v869, %v868
      %v873 = vsel %vm556, %v862, 0
      %v876 = vsel %vm556, %v863, 0
      %v879 = vsel %vm556, %v864, 0
      %v882 = vsel %vm556, %v865, 0
      %884 = vmatprep.subr.bf16.mxu0 0
      %885 = vmatpush1.bf16.msra.mxu0 0
      %886 = vmatprep.subr.bf16.mxu0 0
      %887 = vmatpush1.bf16.msra.mxu0 0
      %888 = vmatprep.subr.bf16.mxu0 0
      %889 = vmatpush1.bf16.msra.mxu0 0
      %890 = vmatprep.subr.bf16.mxu0 0
      %891 = vmatpush1.bf16.msra.mxu0 0
      %892 = vmatprep.subr.bf16.mxu0 0
      %893 = vmatpush1.bf16.msra.mxu0 0
      %894 = vmatprep.subr.bf16.mxu0 0
      %895 = vmatpush1.bf16.msra.mxu0 0
      %896 = vmatprep.subr.bf16.mxu0 0
      %897 = vmatpush1.bf16.msra.mxu0 0
      %898 = vmatprep.subr.bf16.mxu0 0
      %899 = vmatpush1.bf16.msra.mxu0 %v870
      %900 = vmatprep.subr.bf16.mxu0 0
      %901 = vmatpush2.bf16.msra.mxu0 0
      %902 = vmatprep.subr.bf16.mxu0 0
      %903 = vmatpush2.bf16.msra.mxu0 0
      %904 = vmatprep.subr.bf16.mxu0 0
      %905 = vmatpush2.bf16.msra.mxu0 0
      %906 = vmatprep.subr.bf16.mxu0 0
      %907 = vmatpush2.bf16.msra.mxu0 0
      %908 = vmatprep.subr.bf16.mxu0 0
      %909 = vmatpush2.bf16.msra.mxu0 0
      %910 = vmatprep.subr.bf16.mxu0 0
      %911 = vmatpush2.bf16.msra.mxu0 0
      %912 = vmatprep.subr.bf16.mxu0 0
      %913 = vmatpush2.bf16.msra.mxu0 0
      %914 = vmatprep.subr.bf16.mxu0 0
      %915 = vmatpush2.bf16.msra.mxu0 0
      %916 = vmatprep.mubr.bf16.mxu0 0
      %917 = vmatmul.mubr.bf16.gmra.mxu0 %v873
      %v918 = vpop.f32.mrf.mxu0
      %v919 = vadd.f32 0.0, %v918
      %v920 = vpop.f32.mrf.mxu0
      %v921 = vpop.f32.mrf.mxu0
      %v922 = vadd.f32 0.0, %v921
      %v923 = vpop.f32.mrf.mxu0
      %924 = vmatprep.mubr.bf16.mxu0 0
      %925 = vmatmul.mubr.bf16.gmra.mxu0 %v876
      %v926 = vpop.f32.mrf.mxu0
      %v927 = vadd.f32 0.0, %v926
      %v928 = vpop.f32.mrf.mxu0
      %v929 = vpop.f32.mrf.mxu0
      %v930 = vadd.f32 0.0, %v929
      %v931 = vpop.f32.mrf.mxu0
      %932 = vmatprep.mubr.bf16.mxu0 0
      %933 = vmatmul.mubr.bf16.gmra.mxu0 %v879
      %v934 = vpop.f32.mrf.mxu0
      %v935 = vadd.f32 0.0, %v934
      %v936 = vpop.f32.mrf.mxu0
      %v937 = vpop.f32.mrf.mxu0
      %v938 = vadd.f32 0.0, %v937
      %v939 = vpop.f32.mrf.mxu0
      %940 = vmatprep.mubr.bf16.mxu0 0
      %941 = vmatmul.mubr.bf16.gmra.mxu0 %v882
      %v942 = vpop.f32.mrf.mxu0
      %v943 = vadd.f32 0.0, %v942
      %v944 = vpop.f32.mrf.mxu0
      %v945 = vpop.f32.mrf.mxu0
      %v946 = vadd.f32 0.0, %v945
      %v947 = vpop.f32.mrf.mxu0
      %948 = vdwg.mxu0
      %v949 = vadd.f32 %v843, %v919
      %v950 = vadd.f32 %v844, %v922
      %v951 = vadd.f32 %v845, %v927
      %v952 = vadd.f32 %v846, %v930
      %v953 = vadd.f32 %v847, %v935
      %v954 = vadd.f32 %v848, %v938
      %v955 = vadd.f32 %v849, %v943
      %v956 = vadd.f32 %v850, %v946
      %v957 = vpack.c.bf16 %v950, %v949
      %v958 = vpack.c.bf16 %v952, %v951
      %v959 = vpack.c.bf16 %v954, %v953
      %v960 = vpack.c.bf16 %v956, %v955
      %v965 = vunpack.c.l.b16 %v957
      %v966 = vunpack.c.h.b16 %v957
      %v967 = vunpack.c.l.b16 %v958
      %v968 = vunpack.c.h.b16 %v958
      %v969 = vunpack.c.l.b16 %v959
      %v970 = vunpack.c.h.b16 %v959
      %v971 = vunpack.c.l.b16 %v960
      %v972 = vunpack.c.h.b16 %v960
      %v973 = vpack.c.b16 %v965, %v965
      %v974 = vpack.c.b16 %v966, %v966
      %v975 = vpack.c.b16 %v967, %v967
      %v976 = vpack.c.b16 %v968, %v968
      %v977 = vpack.c.b16 %v969, %v969
      %v978 = vpack.c.b16 %v970, %v970
      %v979 = vpack.c.b16 %v971, %v971
      %v980 = vpack.c.b16 %v972, %v972
      %989 = vst [vmem:[%s265] sm:$0xf] %v973
      %990 = vst [vmem:[%s265 + $0x4] sm:$0xf] %v974
      %991 = vst [vmem:[%s265 + $0x8] sm:$0xf] %v975
      %992 = vst [vmem:[%s265 + $0xc] sm:$0xf] %v976
      %993 = vst [vmem:[%s265 + $0x10] sm:$0xf] %v977
      %994 = vst [vmem:[%s265 + $0x14] sm:$0xf] %v978
      %995 = vst [vmem:[%s265 + $0x18] sm:$0xf] %v979
      %996 = vst [vmem:[%s265 + $0x1c] sm:$0xf] %v980
      %v997 = vadd.f32 %v949, %v950
      %v998 = vadd.f32 %v997, %v951
      %v999 = vadd.f32 %v998, %v952
      %v1000 = vadd.f32 %v999, %v953
      %v1001 = vadd.f32 %v1000, %v954
      %v1002 = vadd.f32 %v1001, %v955
      %v1003 = vadd.f32 %v1002, %v956
      %v1004 = vrot.slane %v1003, 4
      %v1005 = vadd.f32 %v1003, %v1004
      %v1006 = vrot.slane %v1005, 2
      %v1007 = vadd.f32 %v1005, %v1006
      %v1008 = vrot.slane %v1007, 1
      %v1009 = vadd.f32 %v1007, %v1008
      %1010 = vst [vmem:[%s269] sm:$0x1] %v1009
      %v1011 = vmul.f32 %v949, %v949
      %v1012 = vmul.f32 %v950, %v950
      %v1013 = vmul.f32 %v951, %v951
      %v1014 = vmul.f32 %v952, %v952
      %v1015 = vmul.f32 %v953, %v953
      %v1016 = vmul.f32 %v954, %v954
      %v1017 = vmul.f32 %v955, %v955
      %v1018 = vmul.f32 %v956, %v956
      %v1019 = vadd.f32 %v1011, %v1012
      %v1020 = vadd.f32 %v1019, %v1013
      %v1021 = vadd.f32 %v1020, %v1014
      %v1022 = vadd.f32 %v1021, %v1015
      %v1023 = vadd.f32 %v1022, %v1016
      %v1024 = vadd.f32 %v1023, %v1017
      %v1025 = vadd.f32 %v1024, %v1018
      %v1026 = vrot.slane %v1025, 4
      %v1027 = vadd.f32 %v1025, %v1026
      %v1028 = vrot.slane %v1027, 2
      %v1029 = vadd.f32 %v1027, %v1028
      %v1030 = vrot.slane %v1029, 1
      %v1031 = vadd.f32 %v1029, %v1030
      %1032 = vst [vmem:[%s272] sm:$0x1] %v1031
      %s1033 = smul.u32 8, %s17
      %p1034 = scmp.lt.s32.totalorder %s1033, 15
      %s1035 = scalar_select %p1034, %s1033, 15
      %s1036 = smul.addr %s1035, 4
      %s1037 = scalar_lea.vmem %s3, %s1036
      %p1038 = scmp.lt.s32.totalorder %s17, 1
      %s1039 = scalar_select %p1038, %s17, 1
      %s1040 = scalar_lea.vmem %s4, %s1039
      %p1041 = scmp.lt.s32.totalorder %s17, 1
      %s1042 = scalar_select %p1041, %s17, 1
      %s1043 = scalar_lea.vmem %s5, %s1042
      // Predicated region
      $region33: #{down_forward.2} parent=31 // pred_check
        %p1044 = pneg %p108
      $region34: #{down_forward.2} parent=31 // pred_check_branch
        %1046 = sbr.rel (%p1044) target = $region36
      $region35: #{down_forward.2} parent=31 // pred_region
        %s1047 = smul.u32 8, %s17
      $region36: #{down_forward.2} parent=31 // pred_fallthru
        _
      // Predicated region
      $region37: #{down_forward.2} parent=31 // pred_check
        %p1048 = pneg %p134
      $region38: #{down_forward.2} parent=31 // pred_check_branch
        %1050 = sbr.rel (%p1048) target = $region40
      $region39: #{down_forward.2} parent=31 // pred_region
        _
      $region40: #{down_forward.2} parent=31 // pred_fallthru
        _
      // Predicated region
      $region41: #{down_forward.2} parent=31 // pred_check
        %p1051 = pneg %p160
      $region42: #{down_forward.2} parent=31 // pred_check_branch
        %1053 = sbr.rel (%p1051) target = $region44
      $region43: #{down_forward.2} parent=31 // pred_region
        _
      $region44: #{down_forward.2} parent=31 // pred_fallthru
        _
    $region32: #{down_forward.2} parent=5 // pred_fallthru
      _
    %p1054 = scmp.le.s32.totalorder 2, %s12
    // Predicated region
    $region45: #{down_forward.2} parent=5 // pred_check
      %p1055 = pneg %p1054
    $region46: #{down_forward.2} parent=5 // pred_check_branch
      %1057 = sbr.rel (%p1055) target = $region48
    $region47: #{down_forward.2} parent=5 // pred_region
      %s1058 = ssub.s32 %s12, 2
      // Predicated region
      $region49: #{down_forward.2} parent=47 // pred_check
        %p1059 = pneg %p114
      $region50: #{down_forward.2} parent=47 // pred_check_branch
        %1061 = sbr.rel (%p1059) target = $region52
      $region51: #{down_forward.2} parent=47 // pred_region
        %s1062 = smul.u32 8, %s18
        %p1063 = scmp.lt.s32.totalorder %s1062, 15
        %s1064 = scalar_select %p1063, %s1062, 15
        %s1065 = smul.addr %s1064, 4
        %s1066 = scalar_lea.vmem %s3, %s1065
      $region52: #{down_forward.2} parent=47 // pred_fallthru
        _
      // Predicated region
      $region53: #{down_forward.2} parent=47 // pred_check
        %p1067 = pneg %p140
      $region54: #{down_forward.2} parent=47 // pred_check_branch
        %1069 = sbr.rel (%p1067) target = $region56
      $region55: #{down_forward.2} parent=47 // pred_region
        %p1070 = scmp.lt.s32.totalorder %s18, 1
        %s1071 = scalar_select %p1070, %s18, 1
        %s1072 = scalar_lea.vmem %s4, %s1071
      $region56: #{down_forward.2} parent=47 // pred_fallthru
        _
      // Predicated region
      $region57: #{down_forward.2} parent=47 // pred_check
        %p1073 = pneg %p166
      $region58: #{down_forward.2} parent=47 // pred_check_branch
        %1075 = sbr.rel (%p1073) target = $region60
      $region59: #{down_forward.2} parent=47 // pred_region
        %p1076 = scmp.lt.s32.totalorder %s18, 1
        %s1077 = scalar_select %p1076, %s18, 1
        %s1078 = scalar_lea.vmem %s5, %s1077
      $region60: #{down_forward.2} parent=47 // pred_fallthru
        _
    $region48: #{down_forward.2} parent=5 // pred_fallthru
      _
  $region6: #{down_forward.2} parent=0 // loop_footer
    %s16 = sadd.s32 1, %s12
  $region7: #{down_forward.2} parent=0 // loop_footer_branch
    %11 = sbr.rel target = $region3
  $region8: #{down_forward.2} parent=0 // loop_exit
    _

</llo_original>
